<compile_context>
chip_gen: v7x
topology: tpu7x:2x2x1
jax: 0.10.0
libtpu: 0.0.40
codegen_flags: <defaults>
</compile_context>

<pallas_src>
import functools

import jax
import jax.numpy as jnp
from jax import lax
from jax.experimental import pallas as pl
from jax.experimental.pallas import tpu as pltpu


_VMEM_BUDGET_BYTES = 24 * 1024 * 1024   # in + 4x out, double buffered, per grid step
_VMEM_LIMIT_BYTES = 32 * 1024 * 1024    # scoped-VMEM limit safe on v5e/v6e/v7x
_CHUNK_OUT_BYTES = 128 * 1024           # ~128 KiB of output per in-kernel chunk
_MIN_BLOCK_IN_BYTES = 512 * 1024        # keep grid blocks >= ~0.5 MiB of input
_TARGET_GRID_STEPS = 8                  # >= 2 TCs on v7x + pipeline ramp


def _sublane_unit(itemsize: int) -> int:
    # f32 -> 8, bf16 -> 16, int8/fp8 -> 32 (packed sublane granularity).
    return {4: 8, 2: 16, 1: 32}.get(itemsize, 8)


def _round_down(x, m):
    return (x // m) * m


def _round_up(x, m):
    return -(-x // m) * m


def _cdiv(a, b):
    return -(-a // b)


def _pick_tiling(total_rows, w, itemsize):
    """Returns (block_rows, row_chunk, grid_steps) for the (total_rows, W) view."""
    sub = _sublane_unit(itemsize)
    if total_rows < sub:
        # Tiny input: a single block equal to the full (unaligned) row extent.
        return total_rows, total_rows, 1

    # In-kernel chunk: ~128 KiB of (lane-padded) output live per iteration.
    lane_out = max(4 * w, 128)
    rc = _round_down(max(_CHUNK_OUT_BYTES // (lane_out * itemsize), sub), sub)
    rc = max(min(rc, _round_down(total_rows, sub)), sub)

    # Grid block = a multiple of rc:
    #   * VMEM cap: in + 4x out, double buffered -> ~10x the input-block bytes.
    #   * parallelism cap: aim for >= _TARGET_GRID_STEPS grid steps.
    #   * overhead floor: >= ~0.5 MiB of input per step when the array allows.
    #   * never larger than the array (cdiv grid + masked ragged last block).
    vmem_rows = _round_down(max(_VMEM_BUDGET_BYTES // (10 * w * itemsize), rc), rc)
    min_rows = _round_up(max(_MIN_BLOCK_IN_BYTES // (w * itemsize), 1), rc)
    par_rows = _round_down(max(_cdiv(total_rows, _TARGET_GRID_STEPS), rc), rc)
    block_rows = min(vmem_rows, max(min_rows, par_rows))
    block_rows = max(min(block_rows, _round_down(total_rows, rc)), rc)

    return block_rows, rc, _cdiv(total_rows, block_rows)


def _upsample2x_kernel_vpu(x_ref, o_ref, *, row_chunk):
    """VPU path: broadcast+reshape lane interleave, then store the chunk twice."""
    rows, w = x_ref.shape
    rc = row_chunk
    n_chunks = rows // rc

    def body(i, carry):
        r0 = pl.multiple_of(i * rc, rc)
        x = x_ref[pl.ds(r0, rc), :]                                   # (rc, W)
        # Lane doubling: xw[:, 2j] = xw[:, 2j+1] = x[:, j].
        # TODO(synk): for bf16 a pure-VPU bitcast trick (u | u>>16) could avoid
        # this lane interleave entirely if the reshape lowers to a relayout.
        xw = jnp.broadcast_to(x[:, :, None], (rc, w, 2)).reshape(rc, 2 * w)
        # Row doubling == storing the same lane-doubled chunk into both halves
        # of the contiguous 4W output row (no sublane interleave).
        o_ref[pl.ds(r0, rc), pl.ds(0, 2 * w)] = xw
        o_ref[pl.ds(r0, rc), pl.ds(2 * w, 2 * w)] = xw
        return carry

    lax.fori_loop(0, n_chunks, body, 0, unroll=min(4, n_chunks))


def _upsample2x_kernel_mxu(x_ref, r_ref, o_ref, *, row_chunk):
    """MXU path: lane doubling via a static (W, 2W) 0/1 replication matrix."""
    rows, w = x_ref.shape
    rc = row_chunk
    n_chunks = rows // rc
    rep = r_ref[...]                                                  # (W, 2W)

    def body(i, carry):
        r0 = pl.multiple_of(i * rc, rc)
        x = x_ref[pl.ds(r0, rc), :]                                   # (rc, W)
        # Exact: each output column has exactly one 1.0 weight, f32 accumulation.
        xw = jnp.dot(x, rep, preferred_element_type=jnp.float32).astype(o_ref.dtype)
        o_ref[pl.ds(r0, rc), pl.ds(0, 2 * w)] = xw
        o_ref[pl.ds(r0, rc), pl.ds(2 * w, 2 * w)] = xw
        return carry

    lax.fori_loop(0, n_chunks, body, 0, unroll=min(4, n_chunks))


def upsample2x(x, *, use_mxu=None):
    """2x nearest-neighbour upsample of an NCHW tensor via a Pallas TPU kernel."""
    N, C, H, W = x.shape
    dtype = x.dtype
    itemsize = jnp.dtype(dtype).itemsize
    total_rows = N * C * H

    if use_mxu is None:
        # MXU replication is exact for float dtypes; keep the VPU path for ints
        # (no integer MXU on v7x) and for large-W f32 (v5e would go compute-bound).
        use_mxu = bool(jnp.issubdtype(dtype, jnp.floating)) and (
            W <= (128 if itemsize >= 4 else 256)
        )

    # Free, contiguous reshape: input row k maps to output rows 2k, 2k+1.
    x2d = x.reshape(total_rows, W)

    block_rows, row_chunk, grid_steps = _pick_tiling(total_rows, W, itemsize)

    in_specs = [pl.BlockSpec((block_rows, W), lambda i: (i, 0))]
    args = [x2d]
    if use_mxu:
        # (W, 2W) 0/1 replication matrix: R[j, 2j] = R[j, 2j+1] = 1.
        rep = jnp.repeat(jnp.eye(W, dtype=dtype), 2, axis=1)
        in_specs.append(pl.BlockSpec((W, 2 * W), lambda i: (0, 0)))
        args.append(rep)
        kernel = functools.partial(_upsample2x_kernel_mxu, row_chunk=row_chunk)
        flops = 4 * total_rows * W * W
    else:
        kernel = functools.partial(_upsample2x_kernel_vpu, row_chunk=row_chunk)
        flops = 0

    out2d = pl.pallas_call(
        kernel,
        out_shape=jax.ShapeDtypeStruct((total_rows, 4 * W), dtype),
        grid_spec=pl.GridSpec(
            grid=(grid_steps,),
            in_specs=in_specs,
            out_specs=pl.BlockSpec((block_rows, 4 * W), lambda i: (i, 0)),
        ),
        compiler_params=pltpu.CompilerParams(
            dimension_semantics=("parallel",),
            vmem_limit_bytes=_VMEM_LIMIT_BYTES,
        ),
        cost_estimate=pl.CostEstimate(
            flops=flops,
            transcendentals=0,
            bytes_accessed=5 * total_rows * W * itemsize,  # read 1x, write 4x
        ),
    )(*args)

    # Free, contiguous reshape: (N*C*H, 4W) == (N, C, H, 2, 2W) -> (N, C, 2H, 2W).
    # TODO(synk): for very narrow feature maps (4W < 128) fuse g adjacent rows
    # per kernel row to keep stores lane-dense (block-diagonal rep matrix).
    return out2d.reshape(N, C, 2 * H, 2 * W)


if __name__ == "__main__":
    key = jax.random.PRNGKey(0)
    k1, k2 = jax.random.split(key)

    def ref_upsample(v):
        # Reference (pure JAX, mirrors torch tensordot with ones + permute + reshape).
        return jnp.repeat(jnp.repeat(v, 2, axis=2), 2, axis=3)

    # Primary shape from the module spec.
    N, C, H, W = 2, 4, 16, 16
    x = jax.random.normal(k1, (N, C, H, W), dtype=jnp.float32)

    y = upsample2x(x)                        # auto path (MXU rep-matrix here)
    jax.block_until_ready(y)
    assert y.shape == (N, C, 2 * H, 2 * W), y.shape
    assert y.dtype == x.dtype, y.dtype
    assert jnp.allclose(y, ref_upsample(x)), "MXU path mismatch vs reference"

    y_vpu = upsample2x(x, use_mxu=False)     # VPU lane-interleave path
    jax.block_until_ready(y_vpu)
    assert jnp.allclose(y_vpu, ref_upsample(x)), "VPU path mismatch vs reference"

    # Ragged row count (N*C*H = 60): exercises the cdiv grid + masked last block.
    x2 = jax.random.normal(k2, (1, 3, 20, 16), dtype=jnp.float32)
    y2 = upsample2x(x2)
    jax.block_until_ready(y2)
    assert y2.shape == (1, 3, 40, 32), y2.shape
    assert jnp.allclose(y2, ref_upsample(x2)), "ragged-grid mismatch vs reference"

    # bf16 (sublane unit 16) sanity check.
    x3 = x.astype(jnp.bfloat16)
    y3 = upsample2x(x3)
    jax.block_until_ready(y3)
    assert y3.dtype == jnp.bfloat16
    assert jnp.allclose(y3.astype(jnp.float32),
                        ref_upsample(x3).astype(jnp.float32)), "bf16 mismatch"

    print("KERNEL_OK")
</pallas_src>

<mosaic_0001>
module attributes {stable_mosaic.version = 11 : i64} {
  func.func @_upsample2x_kernel_mxu(%arg0: i32, %arg1: memref<128x16xf32, #tpu.memory_space<vmem>>, %arg2: memref<16x32xf32, #tpu.memory_space<vmem>>, %arg3: memref<128x64xf32, #tpu.memory_space<vmem>>) attributes {dimension_semantics = [#tpu.dimension_semantics<parallel>], iteration_bounds = array<i64: 1>, scalar_prefetch = 0 : i64, scratch_operands = 0 : i64, tpu.core_type = #tpu.core_type<tc>, window_params = [{transform_indices = @transform_0, window_bounds = array<i64: 128, 16>}, {pipeline_mode = #tpu.pipeline_mode<synchronous>, transform_indices = @transform_1, window_bounds = array<i64: 16, 32>}, {transform_indices = @transform_2, window_bounds = array<i64: 128, 64>}]} {
    %c0 = arith.constant 0 : index
    %c0_0 = arith.constant 0 : index
    %0 = vector.load %arg2[%c0, %c0_0] : memref<16x32xf32, #tpu.memory_space<vmem>>, vector<16x32xf32>
    %c0_i32 = arith.constant 0 : i32
    %c128_i32 = arith.constant 128 : i32
    %1 = arith.muli %c0_i32, %c128_i32 : i32
    %2 = tpu.assume_multiple %1, 128 : i32
    %3 = arith.index_cast %2 : i32 to index
    %c0_1 = arith.constant 0 : index
    %4 = vector.load %arg1[%3, %c0_1] : memref<128x16xf32, #tpu.memory_space<vmem>>, vector<128x16xf32>
    %cst = arith.constant dense<0.000000e+00> : vector<128x32xf32>
    %5 = tpu.matmul %4, %0, %cst {dimension_numbers = #tpu.dot_dimension_numbers<[1], [0], [0], [1], [0, 0, 1, 1], [], []>} : vector<128x16xf32>, vector<16x32xf32>, vector<128x32xf32> -> vector<128x32xf32>
    %6 = arith.index_cast %2 : i32 to index
    %c0_2 = arith.constant 0 : index
    %7 = vector.load %arg3[%6, %c0_2] : memref<128x64xf32, #tpu.memory_space<vmem>>, vector<128x32xf32>
    tpu.vector_store %arg3[%6, %c0_2], %5 {strides = array<i32>} : memref<128x64xf32, #tpu.memory_space<vmem>>, vector<128x32xf32>,
    %8 = arith.index_cast %2 : i32 to index
    %c32 = arith.constant 32 : index
    %9 = vector.load %arg3[%8, %c32] : memref<128x64xf32, #tpu.memory_space<vmem>>, vector<128x32xf32>
    tpu.vector_store %arg3[%8, %c32], %5 {strides = array<i32>} : memref<128x64xf32, #tpu.memory_space<vmem>>, vector<128x32xf32>,
    %c1_i32 = arith.constant 1 : i32
    return
  }
  func.func @transform_0(%arg0: i32) -> (i32, i32) {
    %c0_i32 = arith.constant 0 : i32
    %c0_i32_0 = arith.constant 0 : i32
    return %arg0, %c0_i32 : i32, i32
  }
  func.func @transform_1(%arg0: i32) -> (i32, i32) {
    %c0_i32 = arith.constant 0 : i32
    %c0_i32_0 = arith.constant 0 : i32
    %c0_i32_1 = arith.constant 0 : i32
    return %c0_i32, %c0_i32_0 : i32, i32
  }
  func.func @transform_2(%arg0: i32) -> (i32, i32) {
    %c0_i32 = arith.constant 0 : i32
    %c0_i32_0 = arith.constant 0 : i32
    return %arg0, %c0_i32 : i32, i32
  }
}

</mosaic_0001>

<llo_original>
// kernel: tpu_custom_call.1
$region0: #{tpu_custom_call.1}
  #allocation0 [shape = 'u32[]', space=smem, size = 0x4, offset = 0x4, fixed_abs, tag = 'smem constant byte address 0x4 - core index']
  #allocation1 [shape = 'u32[144,128]{1,0:T(1,128)}', space=vmem, size = 0x12000, scoped, tag = 'internal scratch']
  %s0 = inlined_call_operand.vmem [shape: f32[128,16], index: 0, kind: input, shape index: {}]
  %s1 = inlined_call_operand.vmem [shape: f32[16,32], index: 1, kind: input, shape index: {}]
  %s2 = inlined_call_operand.vmem [shape: f32[128,64], index: 2, kind: output, shape index: {}]
  %s3 = sld [smem:[#allocation0]]
  $region18: #{tpu_custom_call.1} parent=0
    _
  %s5 = ssub.s32 1, %s3
  %s6 = scalar_select 0, %s5, %s3
  // Predicated region
  $region2: #{tpu_custom_call.1} parent=0 // pred_check
    _
  $region3: #{tpu_custom_call.1} parent=0 // pred_check_branch
    %8 = sbr.rel (0) target = $region5
  $region4: #{tpu_custom_call.1} parent=0 // pred_region
    _
  $region5: #{tpu_custom_call.1} parent=0 // pred_fallthru
    _
  // Predicated region
  $region6: #{tpu_custom_call.1} parent=0 // pred_check
    _
  $region7: #{tpu_custom_call.1} parent=0 // pred_check_branch
    %10 = sbr.rel (0) target = $region9
  $region8: #{tpu_custom_call.1} parent=0 // pred_region
    _
  $region9: #{tpu_custom_call.1} parent=0 // pred_fallthru
    _
  %v11 = vld [vmem:[%s1] sm:$0xff]
  %v12 = vld [vmem:[%s1 + $0x8] sm:$0xff]
  %v13 = vld [vmem:[%s0] sm:$0xff]
  %v14 = vld [vmem:[%s0 + $0x8] sm:$0xff]
  %v15 = vld [vmem:[%s0 + $0x10] sm:$0xff]
  %v16 = vld [vmem:[%s0 + $0x18] sm:$0xff]
  %v17 = vld [vmem:[%s0 + $0x20] sm:$0xff]
  %v18 = vld [vmem:[%s0 + $0x28] sm:$0xff]
  %v19 = vld [vmem:[%s0 + $0x30] sm:$0xff]
  %v20 = vld [vmem:[%s0 + $0x38] sm:$0xff]
  %v21 = vld [vmem:[%s0 + $0x40] sm:$0xff]
  %v22 = vld [vmem:[%s0 + $0x48] sm:$0xff]
  %v23 = vld [vmem:[%s0 + $0x50] sm:$0xff]
  %v24 = vld [vmem:[%s0 + $0x58] sm:$0xff]
  %v25 = vld [vmem:[%s0 + $0x60] sm:$0xff]
  %v26 = vld [vmem:[%s0 + $0x68] sm:$0xff]
  %v27 = vld [vmem:[%s0 + $0x70] sm:$0xff]
  %v28 = vld [vmem:[%s0 + $0x78] sm:$0xff]
  %vm29 = vcmask 130048
  %v31 = vsel %vm29, %v13, 0
  %v34 = vsel %vm29, %v14, 0
  %v37 = vsel %vm29, %v15, 0
  %v40 = vsel %vm29, %v16, 0
  %v43 = vsel %vm29, %v17, 0
  %v46 = vsel %vm29, %v18, 0
  %v49 = vsel %vm29, %v19, 0
  %v52 = vsel %vm29, %v20, 0
  %v55 = vsel %vm29, %v21, 0
  %v58 = vsel %vm29, %v22, 0
  %v61 = vsel %vm29, %v23, 0
  %v64 = vsel %vm29, %v24, 0
  %v67 = vsel %vm29, %v25, 0
  %v70 = vsel %vm29, %v26, 0
  %v73 = vsel %vm29, %v27, 0
  %v76 = vsel %vm29, %v28, 0
  %78 = vmatprep.subr.mxu0 0.0
  %79 = vmatpush1.msra.mxu0 %v11
  %80 = vmatprep.subr.mxu0 0.0
  %81 = vmatpush1.msra.mxu0 %v12
  %82 = vmatprep.subr.mxu0 0.0
  %83 = vmatpush1.msra.mxu0 0.0
  %84 = vmatprep.subr.mxu0 0.0
  %85 = vmatpush1.msra.mxu0 0.0
  %86 = vmatprep.subr.mxu0 0.0
  %87 = vmatpush1.msra.mxu0 0.0
  %88 = vmatprep.subr.mxu0 0.0
  %89 = vmatpush1.msra.mxu0 0.0
  %90 = vmatprep.subr.mxu0 0.0
  %91 = vmatpush1.msra.mxu0 0.0
  %92 = vmatprep.subr.mxu0 0.0
  %93 = vmatpush1.msra.mxu0 0.0
  %94 = vmatprep.subr.mxu0 0.0
  %95 = vmatpush1.msra.mxu0 0.0
  %96 = vmatprep.subr.mxu0 0.0
  %97 = vmatpush1.msra.mxu0 0.0
  %98 = vmatprep.subr.mxu0 0.0
  %99 = vmatpush1.msra.mxu0 0.0
  %100 = vmatprep.subr.mxu0 0.0
  %101 = vmatpush1.msra.mxu0 0.0
  %102 = vmatprep.subr.mxu0 0.0
  %103 = vmatpush1.msra.mxu0 0.0
  %104 = vmatprep.subr.mxu0 0.0
  %105 = vmatpush1.msra.mxu0 0.0
  %106 = vmatprep.subr.mxu0 0.0
  %107 = vmatpush1.msra.mxu0 0.0
  %108 = vmatprep.subr.mxu0 0.0
  %109 = vmatpush1.msra.mxu0 0.0
  %110 = vmatprep.subr.mxu0 0.0
  %111 = vmatpush1.msra.mxu0 0.0
  %112 = vmatprep.subr.mxu0 0.0
  %113 = vmatpush1.msra.mxu0 0.0
  %114 = vmatprep.subr.mxu0 0.0
  %115 = vmatpush1.msra.mxu0 0.0
  %116 = vmatprep.subr.mxu0 0.0
  %117 = vmatpush1.msra.mxu0 0.0
  %118 = vmatprep.subr.mxu0 0.0
  %119 = vmatpush1.msra.mxu0 0.0
  %120 = vmatprep.subr.mxu0 0.0
  %121 = vmatpush1.msra.mxu0 0.0
  %122 = vmatprep.subr.mxu0 0.0
  %123 = vmatpush1.msra.mxu0 0.0
  %124 = vmatprep.subr.mxu0 0.0
  %125 = vmatpush1.msra.mxu0 0.0
  %126 = vmatprep.subr.mxu0 0.0
  %127 = vmatpush1.msra.mxu0 0.0
  %128 = vmatprep.subr.mxu0 0.0
  %129 = vmatpush1.msra.mxu0 0.0
  %130 = vmatprep.subr.mxu0 0.0
  %131 = vmatpush1.msra.mxu0 0.0
  %132 = vmatprep.subr.mxu0 0.0
  %133 = vmatpush1.msra.mxu0 0.0
  %134 = vmatprep.subr.mxu0 0.0
  %135 = vmatpush1.msra.mxu0 0.0
  %136 = vmatprep.subr.mxu0 0.0
  %137 = vmatpush1.msra.mxu0 0.0
  %138 = vmatprep.subr.mxu0 0.0
  %139 = vmatpush1.msra.mxu0 0.0
  %140 = vmatprep.subr.mxu0 0.0
  %141 = vmatpush1.msra.mxu0 0.0
  %142 = vmatprep.mubr.f32.mxu0 0.0
  %143 = vmatmul.mubr.f32.gmra.mrb[0].mxu0 %v31
  %v144 = vpop.f32.mrb[0].mxu0
  %v145 = vadd.f32 0.0, %v144
  %v146 = vpop.f32.mrb[0].mxu0
  %147 = vmatprep.mubr.f32.mxu0 0.0
  %148 = vmatmul.mubr.f32.gmra.mrb[0].mxu0 %v34
  %v149 = vpop.f32.mrb[0].mxu0
  %v150 = vadd.f32 0.0, %v149
  %v151 = vpop.f32.mrb[0].mxu0
  %152 = vmatprep.mubr.f32.mxu0 0.0
  %153 = vmatmul.mubr.f32.gmra.mrb[0].mxu0 %v37
  %v154 = vpop.f32.mrb[0].mxu0
  %v155 = vadd.f32 0.0, %v154
  %v156 = vpop.f32.mrb[0].mxu0
  %157 = vmatprep.mubr.f32.mxu0 0.0
  %158 = vmatmul.mubr.f32.gmra.mrb[0].mxu0 %v40
  %v159 = vpop.f32.mrb[0].mxu0
  %v160 = vadd.f32 0.0, %v159
  %v161 = vpop.f32.mrb[0].mxu0
  %162 = vmatprep.mubr.f32.mxu0 0.0
  %163 = vmatmul.mubr.f32.gmra.mrb[0].mxu0 %v43
  %v164 = vpop.f32.mrb[0].mxu0
  %v165 = vadd.f32 0.0, %v164
  %v166 = vpop.f32.mrb[0].mxu0
  %167 = vmatprep.mubr.f32.mxu0 0.0
  %168 = vmatmul.mubr.f32.gmra.mrb[0].mxu0 %v46
  %v169 = vpop.f32.mrb[0].mxu0
  %v170 = vadd.f32 0.0, %v169
  %v171 = vpop.f32.mrb[0].mxu0
  %172 = vmatprep.mubr.f32.mxu0 0.0
  %173 = vmatmul.mubr.f32.gmra.mrb[0].mxu0 %v49
  %v174 = vpop.f32.mrb[0].mxu0
  %v175 = vadd.f32 0.0, %v174
  %v176 = vpop.f32.mrb[0].mxu0
  %177 = vmatprep.mubr.f32.mxu0 0.0
  %178 = vmatmul.mubr.f32.gmra.mrb[0].mxu0 %v52
  %v179 = vpop.f32.mrb[0].mxu0
  %v180 = vadd.f32 0.0, %v179
  %v181 = vpop.f32.mrb[0].mxu0
  %182 = vmatprep.mubr.f32.mxu0 0.0
  %183 = vmatmul.mubr.f32.gmra.mrb[0].mxu0 %v55
  %v184 = vpop.f32.mrb[0].mxu0
  %v185 = vadd.f32 0.0, %v184
  %v186 = vpop.f32.mrb[0].mxu0
  %187 = vmatprep.mubr.f32.mxu0 0.0
  %188 = vmatmul.mubr.f32.gmra.mrb[0].mxu0 %v58
  %v189 = vpop.f32.mrb[0].mxu0
  %v190 = vadd.f32 0.0, %v189
  %v191 = vpop.f32.mrb[0].mxu0
  %192 = vmatprep.mubr.f32.mxu0 0.0
  %193 = vmatmul.mubr.f32.gmra.mrb[0].mxu0 %v61
  %v194 = vpop.f32.mrb[0].mxu0
  %v195 = vadd.f32 0.0, %v194
  %v196 = vpop.f32.mrb[0].mxu0
  %197 = vmatprep.mubr.f32.mxu0 0.0
  %198 = vmatmul.mubr.f32.gmra.mrb[0].mxu0 %v64
  %v199 = vpop.f32.mrb[0].mxu0
  %v200 = vadd.f32 0.0, %v199
  %v201 = vpop.f32.mrb[0].mxu0
  %202 = vmatprep.mubr.f32.mxu0 0.0
  %203 = vmatmul.mubr.f32.gmra.mrb[0].mxu0 %v67
  %v204 = vpop.f32.mrb[0].mxu0
  %v205 = vadd.f32 0.0, %v204
  %v206 = vpop.f32.mrb[0].mxu0
  %207 = vmatprep.mubr.f32.mxu0 0.0
  %208 = vmatmul.mubr.f32.gmra.mrb[0].mxu0 %v70
  %v209 = vpop.f32.mrb[0].mxu0
  %v210 = vadd.f32 0.0, %v209
  %v211 = vpop.f32.mrb[0].mxu0
  %212 = vmatprep.mubr.f32.mxu0 0.0
  %213 = vmatmul.mubr.f32.gmra.mrb[0].mxu0 %v73
  %v214 = vpop.f32.mrb[0].mxu0
  %v215 = vadd.f32 0.0, %v214
  %v216 = vpop.f32.mrb[0].mxu0
  %217 = vmatprep.mubr.f32.mxu0 0.0
  %218 = vmatmul.mubr.f32.gmra.mrb[0].mxu0 %v76
  %v219 = vpop.f32.mrb[0].mxu0
  %v220 = vadd.f32 0.0, %v219
  %v221 = vpop.f32.mrb[0].mxu0
  %222 = vdwg.mxu0
  %vm223 = vcmask 261120
  %224 = vst.msk [vmem:[%s2] sm:$0xff] %vm223, %v145
  %225 = vst.msk [vmem:[%s2 + $0x8] sm:$0xff] %vm223, %v150
  %226 = vst.msk [vmem:[%s2 + $0x10] sm:$0xff] %vm223, %v155
  %227 = vst.msk [vmem:[%s2 + $0x18] sm:$0xff] %vm223, %v160
  %228 = vst.msk [vmem:[%s2 + $0x20] sm:$0xff] %vm223, %v165
  %229 = vst.msk [vmem:[%s2 + $0x28] sm:$0xff] %vm223, %v170
  %230 = vst.msk [vmem:[%s2 + $0x30] sm:$0xff] %vm223, %v175
  %231 = vst.msk [vmem:[%s2 + $0x38] sm:$0xff] %vm223, %v180
  %232 = vst.msk [vmem:[%s2 + $0x40] sm:$0xff] %vm223, %v185
  %233 = vst.msk [vmem:[%s2 + $0x48] sm:$0xff] %vm223, %v190
  %234 = vst.msk [vmem:[%s2 + $0x50] sm:$0xff] %vm223, %v195
  %235 = vst.msk [vmem:[%s2 + $0x58] sm:$0xff] %vm223, %v200
  %236 = vst.msk [vmem:[%s2 + $0x60] sm:$0xff] %vm223, %v205
  %237 = vst.msk [vmem:[%s2 + $0x68] sm:$0xff] %vm223, %v210
  %238 = vst.msk [vmem:[%s2 + $0x70] sm:$0xff] %vm223, %v215
  %239 = vst.msk [vmem:[%s2 + $0x78] sm:$0xff] %vm223, %v220
  %256 = vrot.lane.b32.xlu0 %v145, 32
  %v257 = vpop.permute.xlu0 %256
  %258 = vrot.lane.b32.xlu0 %v150, 32
  %v259 = vpop.permute.xlu0 %258
  %260 = vrot.lane.b32.xlu0 %v155, 32
  %v261 = vpop.permute.xlu0 %260
  %262 = vrot.lane.b32.xlu0 %v160, 32
  %v263 = vpop.permute.xlu0 %262
  %264 = vrot.lane.b32.xlu0 %v165, 32
  %v265 = vpop.permute.xlu0 %264
  %266 = vrot.lane.b32.xlu0 %v170, 32
  %v267 = vpop.permute.xlu0 %266
  %268 = vrot.lane.b32.xlu0 %v175, 32
  %v269 = vpop.permute.xlu0 %268
  %270 = vrot.lane.b32.xlu0 %v180, 32
  %v271 = vpop.permute.xlu0 %270
  %272 = vrot.lane.b32.xlu0 %v185, 32
  %v273 = vpop.permute.xlu0 %272
  %274 = vrot.lane.b32.xlu0 %v190, 32
  %v275 = vpop.permute.xlu0 %274
  %276 = vrot.lane.b32.xlu0 %v195, 32
  %v277 = vpop.permute.xlu0 %276
  %278 = vrot.lane.b32.xlu0 %v200, 32
  %v279 = vpop.permute.xlu0 %278
  %280 = vrot.lane.b32.xlu0 %v205, 32
  %v281 = vpop.permute.xlu0 %280
  %282 = vrot.lane.b32.xlu0 %v210, 32
  %v283 = vpop.permute.xlu0 %282
  %284 = vrot.lane.b32.xlu0 %v215, 32
  %v285 = vpop.permute.xlu0 %284
  %286 = vrot.lane.b32.xlu0 %v220, 32
  %v287 = vpop.permute.xlu0 %286
  %vm304 = vcmask 523520
  %305 = vst.msk [vmem:[%s2] sm:$0xff] %vm304, %v257
  %306 = vst.msk [vmem:[%s2 + $0x8] sm:$0xff] %vm304, %v259
  %307 = vst.msk [vmem:[%s2 + $0x10] sm:$0xff] %vm304, %v261
  %308 = vst.msk [vmem:[%s2 + $0x18] sm:$0xff] %vm304, %v263
  %309 = vst.msk [vmem:[%s2 + $0x20] sm:$0xff] %vm304, %v265
  %310 = vst.msk [vmem:[%s2 + $0x28] sm:$0xff] %vm304, %v267
  %311 = vst.msk [vmem:[%s2 + $0x30] sm:$0xff] %vm304, %v269
  %312 = vst.msk [vmem:[%s2 + $0x38] sm:$0xff] %vm304, %v271
  %313 = vst.msk [vmem:[%s2 + $0x40] sm:$0xff] %vm304, %v273
  %314 = vst.msk [vmem:[%s2 + $0x48] sm:$0xff] %vm304, %v275
  %315 = vst.msk [vmem:[%s2 + $0x50] sm:$0xff] %vm304, %v277
  %316 = vst.msk [vmem:[%s2 + $0x58] sm:$0xff] %vm304, %v279
  %317 = vst.msk [vmem:[%s2 + $0x60] sm:$0xff] %vm304, %v281
  %318 = vst.msk [vmem:[%s2 + $0x68] sm:$0xff] %vm304, %v283
  %319 = vst.msk [vmem:[%s2 + $0x70] sm:$0xff] %vm304, %v285
  %320 = vst.msk [vmem:[%s2 + $0x78] sm:$0xff] %vm304, %v287
  // Predicated region
  $region10: #{tpu_custom_call.1} parent=0 // pred_check
    _
  $region11: #{tpu_custom_call.1} parent=0 // pred_check_branch
    %322 = sbr.rel (0) target = $region13
  $region12: #{tpu_custom_call.1} parent=0 // pred_region
    _
  $region13: #{tpu_custom_call.1} parent=0 // pred_fallthru
    _
  // Predicated region
  $region14: #{tpu_custom_call.1} parent=0 // pred_check
    _
  $region15: #{tpu_custom_call.1} parent=0 // pred_check_branch
    %324 = sbr.rel (0) target = $region17
  $region16: #{tpu_custom_call.1} parent=0 // pred_region
    _
  $region17: #{tpu_custom_call.1} parent=0 // pred_fallthru
    _

</llo_original>
